<compile_context>
chip_gen: v7x
topology: tpu7x:2x2x1
jax: 0.10.0
libtpu: 0.0.40
codegen_flags: <defaults>
</compile_context>

<pallas_src>
import functools

import jax
import jax.numpy as jnp
from jax.experimental import pallas as pl
from jax.experimental.pallas import tpu as pltpu


def _round_up(x, m):
    return ((x + m - 1) // m) * m


def neuralnet_kernel(x_ref, w1_ref, b1_ref, wh_ref, bh_ref, o_ref):
    # First layer: bf16 matmul on the MXU, f32 accumulation, bias + ReLU in f32.
    x_bf = x_ref[...].astype(jnp.bfloat16)
    h = jnp.dot(x_bf, w1_ref[...], preferred_element_type=jnp.float32)
    h = jnp.maximum(h + b1_ref[...], 0.0)

    # Fused heads: one (hid_pad, out_pad) matmul instead of three narrow ones.
    h_bf = h.astype(jnp.bfloat16)
    o = jnp.dot(h_bf, wh_ref[...], preferred_element_type=jnp.float32)
    o_ref[...] = (o + bh_ref[...]).astype(o_ref.dtype)


def neuralnet_forward(x, params, out_size, block_b=512):
    """x: (B, input_size) f32.

    params: packed kernel params (see pack_params):
      w1: (input_size, hid_pad) bf16,  b1: (1, hid_pad) f32
      wh: (hid_pad,   out_pad) bf16,   bh: (1, out_pad) f32
    Returns the three head outputs, each (B, out_size) f32.
    """
    B, in_size = x.shape
    hid_pad = params["w1"].shape[1]
    out_pad = params["wh"].shape[1]

    # Batch tile: as large as block_b, always a multiple of 8 (sublane), pad B to it.
    TB = min(block_b, _round_up(B, 8))
    Bp = _round_up(B, TB)
    if Bp != B:
        x = jnp.pad(x, ((0, Bp - B), (0, 0)))
    grid = (Bp // TB,)

    vmem = pltpu.MemorySpace.VMEM
    nbytes = lambda a: a.size * a.dtype.itemsize
    cost = pl.CostEstimate(
        flops=2 * Bp * in_size * hid_pad + 2 * Bp * hid_pad * out_pad,
        transcendentals=0,
        bytes_accessed=(nbytes(x) + nbytes(params["w1"]) + nbytes(params["b1"])
                        + nbytes(params["wh"]) + nbytes(params["bh"])
                        + Bp * out_pad * 4),
    )

    out = pl.pallas_call(
        neuralnet_kernel,
        grid=grid,
        in_specs=[
            # x tile streams over the batch axis (double-buffered by Pallas).
            pl.BlockSpec((TB, in_size), lambda i: (i, 0), memory_space=vmem),
            # Weights / biases: constant index_map -> resident in VMEM across the grid.
            pl.BlockSpec((in_size, hid_pad), lambda i: (0, 0), memory_space=vmem),
            pl.BlockSpec((1, hid_pad), lambda i: (0, 0), memory_space=vmem),
            pl.BlockSpec((hid_pad, out_pad), lambda i: (0, 0), memory_space=vmem),
            pl.BlockSpec((1, out_pad), lambda i: (0, 0), memory_space=vmem),
        ],
        out_specs=pl.BlockSpec((TB, out_pad), lambda i: (i, 0), memory_space=vmem),
        out_shape=jax.ShapeDtypeStruct((Bp, out_pad), jnp.float32),
        compiler_params=pltpu.CompilerParams(
            dimension_semantics=("parallel",)),
        cost_estimate=cost,
    )(x, params["w1"], params["b1"], params["wh"], params["bh"])

    # Slice off batch / lane padding and split the fused slab into the three heads
    # (wrapper-side slicing is free layout plumbing).
    heads = out[:B, :3 * out_size]
    x1, x2, x3 = jnp.split(heads, 3, axis=1)
    return x1, x2, x3


def init_params(key, input_size, output_size):
    """Raw f32 params with nn.Linear shapes, stored transposed as (in, out)."""
    hid = 2 * input_size
    ks = jax.random.split(key, 8)

    def linear(kw, kb, fan_in, fan_out):
        bound = 1.0 / jnp.sqrt(fan_in)
        w = jax.random.uniform(kw, (fan_in, fan_out), jnp.float32, -bound, bound)
        b = jax.random.uniform(kb, (fan_out,), jnp.float32, -bound, bound)
        return w, b

    w1, b1 = linear(ks[0], ks[1], input_size, hid)
    w2, b2 = linear(ks[2], ks[3], hid, output_size)
    w3, b3 = linear(ks[4], ks[5], hid, output_size)
    w4, b4 = linear(ks[6], ks[7], hid, output_size)
    return dict(w1=w1, b1=b1, w2=w2, b2=b2, w3=w3, b3=b3, w4=w4, b4=b4)


def pack_params(raw, lane=128):
    """Fuse the three heads, zero-pad hidden/output lanes to multiples of 128,
    and cast matmul weights to bf16 (biases stay f32).  Zero padding preserves
    the exact forward semantics (padded hidden units are relu(0)=0 and padded
    output lanes are sliced off in the wrapper)."""
    in_size, hid = raw["w1"].shape
    out_size = raw["w2"].shape[1]
    hid_pad = _round_up(hid, lane)
    fused_out = 3 * out_size
    out_pad = _round_up(fused_out, lane)

    w1 = jnp.zeros((in_size, hid_pad), jnp.float32).at[:, :hid].set(raw["w1"])
    b1 = jnp.zeros((1, hid_pad), jnp.float32).at[0, :hid].set(raw["b1"])

    wh_raw = jnp.concatenate([raw["w2"], raw["w3"], raw["w4"]], axis=1)  # (hid, 3*out)
    bh_raw = jnp.concatenate([raw["b2"], raw["b3"], raw["b4"]], axis=0)  # (3*out,)
    wh = jnp.zeros((hid_pad, out_pad), jnp.float32).at[:hid, :fused_out].set(wh_raw)
    bh = jnp.zeros((1, out_pad), jnp.float32).at[0, :fused_out].set(bh_raw)

    packed = dict(w1=w1.astype(jnp.bfloat16), b1=b1,
                  wh=wh.astype(jnp.bfloat16), bh=bh)
    return packed, out_size


# TODO(synk): NeuralNEt.save() (torch.save / filesystem I/O) has no Pallas
# equivalent and is intentionally not implemented.

if __name__ == "__main__":
    key = jax.random.PRNGKey(0)
    k_x, k_p = jax.random.split(key)

    batch = 8
    input_size = 32
    output_size = 16

    x = jax.random.normal(k_x, (batch, input_size), jnp.float32)
    raw = init_params(k_p, input_size, output_size)
    packed, out_size = pack_params(raw)

    fwd = jax.jit(functools.partial(neuralnet_forward, out_size=out_size))
    x1, x2, x3 = fwd(x, packed)
    jax.block_until_ready((x1, x2, x3))

    # Reference in plain f32 JAX (same math as the PyTorch forward).
    h_ref = jnp.maximum(x @ raw["w1"] + raw["b1"], 0.0)
    r1 = h_ref @ raw["w2"] + raw["b2"]
    r2 = h_ref @ raw["w3"] + raw["b3"]
    r3 = h_ref @ raw["w4"] + raw["b4"]

    # bf16 matmul operands (f32 accumulation) -> loosened tolerance.
    ok = (jnp.allclose(x1, r1, atol=3e-2, rtol=3e-2)
          and jnp.allclose(x2, r2, atol=3e-2, rtol=3e-2)
          and jnp.allclose(x3, r3, atol=3e-2, rtol=3e-2))
    assert ok, "Pallas output does not match f32 reference"

    print("KERNEL_OK")
</pallas_src>

<mosaic_0001>
module attributes {stable_mosaic.version = 11 : i64} {
  func.func @neuralnet_kernel(%arg0: i32, %arg1: memref<8x32xf32, #tpu.memory_space<vmem>>, %arg2: memref<32x128xbf16, #tpu.memory_space<vmem>>, %arg3: memref<1x128xf32, #tpu.memory_space<vmem>>, %arg4: memref<128x128xbf16, #tpu.memory_space<vmem>>, %arg5: memref<1x128xf32, #tpu.memory_space<vmem>>, %arg6: memref<8x128xf32, #tpu.memory_space<vmem>>) attributes {dimension_semantics = [#tpu.dimension_semantics<parallel>], iteration_bounds = array<i64: 1>, scalar_prefetch = 0 : i64, scratch_operands = 0 : i64, tpu.core_type = #tpu.core_type<tc>, window_params = [{transform_indices = @transform_0, window_bounds = array<i64: 8, 32>}, {pipeline_mode = #tpu.pipeline_mode<synchronous>, transform_indices = @transform_1, window_bounds = array<i64: 32, 128>}, {pipeline_mode = #tpu.pipeline_mode<synchronous>, transform_indices = @transform_2, window_bounds = array<i64: 1, 128>}, {pipeline_mode = #tpu.pipeline_mode<synchronous>, transform_indices = @transform_3, window_bounds = array<i64: 128, 128>}, {pipeline_mode = #tpu.pipeline_mode<synchronous>, transform_indices = @transform_4, window_bounds = array<i64: 1, 128>}, {transform_indices = @transform_5, window_bounds = array<i64: 8, 128>}]} {
    %c0 = arith.constant 0 : index
    %c0_0 = arith.constant 0 : index
    %0 = vector.load %arg1[%c0, %c0_0] : memref<8x32xf32, #tpu.memory_space<vmem>>, vector<8x32xf32>
    %1 = arith.truncf %0 : vector<8x32xf32> to vector<8x32xbf16>
    %c0_1 = arith.constant 0 : index
    %c0_2 = arith.constant 0 : index
    %2 = vector.load %arg2[%c0_1, %c0_2] : memref<32x128xbf16, #tpu.memory_space<vmem>>, vector<32x128xbf16>
    %cst = arith.constant dense<0.000000e+00> : vector<8x128xf32>
    %3 = tpu.matmul %1, %2, %cst {dimension_numbers = #tpu.dot_dimension_numbers<[1], [0], [0], [1], [0, 0, 1, 1], [], []>} : vector<8x32xbf16>, vector<32x128xbf16>, vector<8x128xf32> -> vector<8x128xf32>
    %c0_3 = arith.constant 0 : index
    %c0_4 = arith.constant 0 : index
    %4 = vector.load %arg3[%c0_3, %c0_4] : memref<1x128xf32, #tpu.memory_space<vmem>>, vector<1x128xf32>
    %5 = vector.broadcast %4 : vector<1x128xf32> to vector<8x128xf32>
    %6 = arith.addf %3, %5 : vector<8x128xf32>
    %cst_5 = arith.constant 0.000000e+00 : f32
    %7 = vector.broadcast %cst_5 : f32 to vector<8x128xf32>
    %8 = arith.maximumf %6, %7 : vector<8x128xf32>
    %9 = arith.truncf %8 : vector<8x128xf32> to vector<8x128xbf16>
    %c0_6 = arith.constant 0 : index
    %c0_7 = arith.constant 0 : index
    %10 = vector.load %arg4[%c0_6, %c0_7] : memref<128x128xbf16, #tpu.memory_space<vmem>>, vector<128x128xbf16>
    %cst_8 = arith.constant dense<0.000000e+00> : vector<8x128xf32>
    %11 = tpu.matmul %9, %10, %cst_8 {dimension_numbers = #tpu.dot_dimension_numbers<[1], [0], [0], [1], [0, 0, 1, 1], [], []>} : vector<8x128xbf16>, vector<128x128xbf16>, vector<8x128xf32> -> vector<8x128xf32>
    %c0_9 = arith.constant 0 : index
    %c0_10 = arith.constant 0 : index
    %12 = vector.load %arg5[%c0_9, %c0_10] : memref<1x128xf32, #tpu.memory_space<vmem>>, vector<1x128xf32>
    %13 = vector.broadcast %12 : vector<1x128xf32> to vector<8x128xf32>
    %14 = arith.addf %11, %13 : vector<8x128xf32>
    %c0_11 = arith.constant 0 : index
    %c0_12 = arith.constant 0 : index
    %15 = vector.load %arg6[%c0_11, %c0_12] : memref<8x128xf32, #tpu.memory_space<vmem>>, vector<8x128xf32>
    tpu.vector_store %arg6[%c0_11, %c0_12], %14 {strides = array<i32>} : memref<8x128xf32, #tpu.memory_space<vmem>>, vector<8x128xf32>,
    return
  }
  func.func @transform_0(%arg0: i32) -> (i32, i32) {
    %c0_i32 = arith.constant 0 : i32
    %c0_i32_0 = arith.constant 0 : i32
    return %arg0, %c0_i32 : i32, i32
  }
  func.func @transform_1(%arg0: i32) -> (i32, i32) {
    %c0_i32 = arith.constant 0 : i32
    %c0_i32_0 = arith.constant 0 : i32
    %c0_i32_1 = arith.constant 0 : i32
    return %c0_i32, %c0_i32_0 : i32, i32
  }
  func.func @transform_2(%arg0: i32) -> (i32, i32) {
    %c0_i32 = arith.constant 0 : i32
    %c0_i32_0 = arith.constant 0 : i32
    %c0_i32_1 = arith.constant 0 : i32
    return %c0_i32, %c0_i32_0 : i32, i32
  }
  func.func @transform_3(%arg0: i32) -> (i32, i32) {
    %c0_i32 = arith.constant 0 : i32
    %c0_i32_0 = arith.constant 0 : i32
    %c0_i32_1 = arith.constant 0 : i32
    return %c0_i32, %c0_i32_0 : i32, i32
  }
  func.func @transform_4(%arg0: i32) -> (i32, i32) {
    %c0_i32 = arith.constant 0 : i32
    %c0_i32_0 = arith.constant 0 : i32
    %c0_i32_1 = arith.constant 0 : i32
    return %c0_i32, %c0_i32_0 : i32, i32
  }
  func.func @transform_5(%arg0: i32) -> (i32, i32) {
    %c0_i32 = arith.constant 0 : i32
    %c0_i32_0 = arith.constant 0 : i32
    return %arg0, %c0_i32 : i32, i32
  }
}

</mosaic_0001>

<llo_original>
// kernel: neuralnet_forward.1
$region0: #{neuralnet_forward.1}
  #allocation0 [shape = 'u32[]', space=smem, size = 0x4, offset = 0x4, fixed_abs, tag = 'smem constant byte address 0x4 - core index']
  #allocation1 [shape = 'u32[144,128]{1,0:T(1,128)}', space=vmem, size = 0x12000, scoped, tag = 'internal scratch']
  %s0 = inlined_call_operand.hbm [shape: f32[8,32], index: 0, kind: input, shape index: {}]
  %s1 = inlined_call_operand.hbm [shape: bf16[32,128], index: 1, kind: input, shape index: {}]
  %s2 = inlined_call_operand.vmem [shape: f32[1,128], index: 2, kind: input, shape index: {}]
  %s3 = inlined_call_operand.hbm [shape: bf16[128,128], index: 3, kind: input, shape index: {}]
  %s4 = inlined_call_operand.vmem [shape: f32[1,128], index: 4, kind: input, shape index: {}]
  %s5 = inlined_call_operand.vmem [shape: f32[8,128], index: 5, kind: output, shape index: {}]
  %s6 = sld [smem:[#allocation0]]
  $region42: #{neuralnet_forward.1} parent=0
    _
  %s8 = ssub.s32 1, %s6
  %s9 = scalar_select 0, %s8, %s6
  $region1: #{neuralnet_forward.1} parent=0
    #allocation2 [shape = 'u8[4096]{0}', space=vmem, size = 0x1000, scoped, tag = 'input window, operand 0, single buffered']
    #allocation3 [shape = 's32[1]{0}', space=sflag, size = 0x4, scoped, tag = 'scoped memory for neuralnet_forward.1']
    #allocation4 [shape = 'u8[8192]{0}', space=vmem, size = 0x2000, scoped, tag = 'input window, operand 1, single buffered']
    #allocation5 [shape = 's32[1]{0}', space=sflag, size = 0x4, scoped, tag = 'scoped memory for neuralnet_forward.1']
    #allocation6 [shape = 'u8[32768]{0}', space=vmem, size = 0x8000, scoped, tag = 'input window, operand 3, single buffered']
    %10 = vsyncpa [#allocation3], 0
    %11 = vsyncpa [#allocation5], 0
    // Predicated region
    $region2: #{neuralnet_forward.1} parent=1 // pred_check
      _
    $region3: #{neuralnet_forward.1} parent=1 // pred_check_branch
      %13 = sbr.rel (0) target = $region5
    $region4: #{neuralnet_forward.1} parent=1 // pred_region
      %s15 = ssub.s32 128, 128
      %16 = vsyncadd [#allocation3], %s15
      %s18 = sshll.u32 [#allocation2], 4
      %s19 = int_to_ptr.vmem [resolvable:$true] %s18
      %21 = dma.hbm_to_vmem [thread:$0]  %s0, 128, %s19, [#allocation3]
    $region5: #{neuralnet_forward.1} parent=1 // pred_fallthru
      _
    // Predicated region
    $region6: #{neuralnet_forward.1} parent=1 // pred_check
      _
    $region7: #{neuralnet_forward.1} parent=1 // pred_check_branch
      %23 = sbr.rel (0) target = $region9
    $region8: #{neuralnet_forward.1} parent=1 // pred_region
      %s25 = ssub.s32 256, 256
      %26 = vsyncadd [#allocation5], %s25
      %s27 = sshll.u32 [#allocation4], 4
      %s28 = int_to_ptr.vmem [resolvable:$true] %s27
      %33 = dma.hbm_to_vmem [thread:$0]  %s1, 256, %s28, [#allocation5], 64, 64, 4
    $region9: #{neuralnet_forward.1} parent=1 // pred_fallthru
      _
    // Predicated region
    $region10: #{neuralnet_forward.1} parent=1 // pred_check
      _
    $region11: #{neuralnet_forward.1} parent=1 // pred_check_branch
      %35 = sbr.rel (0) target = $region13
    $region12: #{neuralnet_forward.1} parent=1 // pred_region
      _
    $region13: #{neuralnet_forward.1} parent=1 // pred_fallthru
      _
    // Predicated region
    $region14: #{neuralnet_forward.1} parent=1 // pred_check
      _
    $region15: #{neuralnet_forward.1} parent=1 // pred_check_branch
      %37 = sbr.rel (0) target = $region17
    $region16: #{neuralnet_forward.1} parent=1 // pred_region
      %s39 = ssub.s32 1024, 1024
      %40 = vsyncadd [#allocation5], %s39
      %s41 = sshll.u32 [#allocation6], 4
      %s42 = int_to_ptr.vmem [resolvable:$true] %s41
      %47 = dma.hbm_to_vmem [thread:$0]  %s3, 1024, %s42, [#allocation5], 64, 64, 4
    $region17: #{neuralnet_forward.1} parent=1 // pred_fallthru
      _
    // Predicated region
    $region18: #{neuralnet_forward.1} parent=1 // pred_check
      _
    $region19: #{neuralnet_forward.1} parent=1 // pred_check_branch
      %49 = sbr.rel (0) target = $region21
    $region20: #{neuralnet_forward.1} parent=1 // pred_region
      _
    $region21: #{neuralnet_forward.1} parent=1 // pred_fallthru
      _
    // Predicated region
    $region22: #{neuralnet_forward.1} parent=1 // pred_check
      _
    $region23: #{neuralnet_forward.1} parent=1 // pred_check_branch
      %51 = sbr.rel (0) target = $region25
    $region24: #{neuralnet_forward.1} parent=1 // pred_region
      %52 = dma.done [#allocation3], 128
    $region25: #{neuralnet_forward.1} parent=1 // pred_fallthru
      _
    // Predicated region
    $region26: #{neuralnet_forward.1} parent=1 // pred_check
      _
    $region27: #{neuralnet_forward.1} parent=1 // pred_check_branch
      %54 = sbr.rel (0) target = $region29
    $region28: #{neuralnet_forward.1} parent=1 // pred_region
      %55 = dma.done [#allocation5], 256
    $region29: #{neuralnet_forward.1} parent=1 // pred_fallthru
      _
    // Predicated region
    $region30: #{neuralnet_forward.1} parent=1 // pred_check
      _
    $region31: #{neuralnet_forward.1} parent=1 // pred_check_branch
      %57 = sbr.rel (0) target = $region33
    $region32: #{neuralnet_forward.1} parent=1 // pred_region
      %58 = dma.done [#allocation5], 1024
    $region33: #{neuralnet_forward.1} parent=1 // pred_fallthru
      _
    %v60 = vld [vmem:[#allocation2] sm:$0xff]
    %v61 = vpack.c.bf16 %v60, %v60
    %v62 = vld [vmem:[#allocation4] sm:$0xf]
    %v63 = vld [vmem:[#allocation4 + $0x4] sm:$0xf]
    %v64 = vld [vmem:[#allocation4 + $0x8] sm:$0xf]
    %v65 = vld [vmem:[#allocation4 + $0xc] sm:$0xf]
    %v66 = vld [vmem:[%s2] sm:$0x1]
    %v68 = vlaneseq
    %v69 = vshrl.u32 %v68, 7
    %v70 = vsub.s32 0, %v69
    %v71 = vrot.slane %v66, %v70
    %v77 = vunpack.c.l.b16 %v62
    %v78 = vunpack.c.l.b16 %v63
    %v79 = vunpack.c.l.b16 %v64
    %v80 = vunpack.c.l.b16 %v65
    %v81 = vpack.c.b16 %v78, %v77
    %v82 = vpack.c.b16 %v80, %v79
    %vm85 = vcmask 261120
    %v87 = vsel %vm85, %v61, 0
    %89 = vmatprep.subr.bf16.mxu0 0
    %90 = vmatpush1.bf16.msra.mxu0 %v81
    %91 = vmatprep.subr.bf16.mxu0 0
    %92 = vmatpush1.bf16.msra.mxu0 %v82
    %93 = vmatprep.subr.bf16.mxu0 0
    %94 = vmatpush1.bf16.msra.mxu0 0
    %95 = vmatprep.subr.bf16.mxu0 0
    %96 = vmatpush1.bf16.msra.mxu0 0
    %97 = vmatprep.subr.bf16.mxu0 0
    %98 = vmatpush1.bf16.msra.mxu0 0
    %99 = vmatprep.subr.bf16.mxu0 0
    %100 = vmatpush1.bf16.msra.mxu0 0
    %101 = vmatprep.subr.bf16.mxu0 0
    %102 = vmatpush1.bf16.msra.mxu0 0
    %103 = vmatprep.subr.bf16.mxu0 0
    %104 = vmatpush1.bf16.msra.mxu0 0
    %105 = vmatprep.subr.bf16.mxu0 0
    %106 = vmatpush1.bf16.msra.mxu0 0
    %107 = vmatprep.subr.bf16.mxu0 0
    %108 = vmatpush1.bf16.msra.mxu0 0
    %109 = vmatprep.subr.bf16.mxu0 0
    %110 = vmatpush1.bf16.msra.mxu0 0
    %111 = vmatprep.subr.bf16.mxu0 0
    %112 = vmatpush1.bf16.msra.mxu0 0
    %113 = vmatprep.subr.bf16.mxu0 0
    %114 = vmatpush1.bf16.msra.mxu0 0
    %115 = vmatprep.subr.bf16.mxu0 0
    %116 = vmatpush1.bf16.msra.mxu0 0
    %117 = vmatprep.subr.bf16.mxu0 0
    %118 = vmatpush1.bf16.msra.mxu0 0
    %119 = vmatprep.subr.bf16.mxu0 0
    %120 = vmatpush1.bf16.msra.mxu0 0
    %121 = vmatprep.mubr.bf16.mxu0 0
    %122 = vmatmul.mubr.bf16.gmra.mrb[0].mxu0 %v87
    %v123 = vpop.f32.mrb[0].mxu0
    %v124 = vadd.f32 %v71, %v123
    %v125 = vpop.f32.mrb[0].mxu0
    %v126 = vpop.f32.mrb[0].mxu0
    %v127 = vpop.f32.mrb[0].mxu0
    %128 = vdwg.mxu0
    %v129 = vmax.f32 %v124, 0.0
    %v130 = vpack.c.bf16 %v129, %v129
    %v131 = vld [vmem:[#allocation6] sm:$0xf]
    %v132 = vld [vmem:[#allocation6 + $0x4] sm:$0xf]
    %v133 = vld [vmem:[#allocation6 + $0x8] sm:$0xf]
    %v134 = vld [vmem:[#allocation6 + $0xc] sm:$0xf]
    %v135 = vld [vmem:[#allocation6 + $0x10] sm:$0xf]
    %v136 = vld [vmem:[#allocation6 + $0x14] sm:$0xf]
    %v137 = vld [vmem:[#allocation6 + $0x18] sm:$0xf]
    %v138 = vld [vmem:[#allocation6 + $0x1c] sm:$0xf]
    %v139 = vld [vmem:[#allocation6 + $0x20] sm:$0xf]
    %v140 = vld [vmem:[#allocation6 + $0x24] sm:$0xf]
    %v141 = vld [vmem:[#allocation6 + $0x28] sm:$0xf]
    %v142 = vld [vmem:[#allocation6 + $0x2c] sm:$0xf]
    %v143 = vld [vmem:[#allocation6 + $0x30] sm:$0xf]
    %v144 = vld [vmem:[#allocation6 + $0x34] sm:$0xf]
    %v145 = vld [vmem:[#allocation6 + $0x38] sm:$0xf]
    %v146 = vld [vmem:[#allocation6 + $0x3c] sm:$0xf]
    %v147 = vld [vmem:[%s4] sm:$0x1]
    %v149 = vlaneseq
    %v150 = vshrl.u32 %v149, 7
    %v151 = vsub.s32 0, %v150
    %v152 = vrot.slane %v147, %v151
    %v170 = vunpack.c.l.b16 %v131
    %v171 = vunpack.c.l.b16 %v132
    %v172 = vunpack.c.l.b16 %v133
    %v173 = vunpack.c.l.b16 %v134
    %v174 = vunpack.c.l.b16 %v135
    %v175 = vunpack.c.l.b16 %v136
    %v176 = vunpack.c.l.b16 %v137
    %v177 = vunpack.c.l.b16 %v138
    %v178 = vunpack.c.l.b16 %v139
    %v179 = vunpack.c.l.b16 %v140
    %v180 = vunpack.c.l.b16 %v141
    %v181 = vunpack.c.l.b16 %v142
    %v182 = vunpack.c.l.b16 %v143
    %v183 = vunpack.c.l.b16 %v144
    %v184 = vunpack.c.l.b16 %v145
    %v185 = vunpack.c.l.b16 %v146
    %v186 = vpack.c.b16 %v171, %v170
    %v187 = vpack.c.b16 %v173, %v172
    %v188 = vpack.c.b16 %v175, %v174
    %v189 = vpack.c.b16 %v177, %v176
    %v190 = vpack.c.b16 %v179, %v178
    %v191 = vpack.c.b16 %v181, %v180
    %v192 = vpack.c.b16 %v183, %v182
    %v193 = vpack.c.b16 %v185, %v184
    %202 = vmatprep.subr.bf16.mxu0 0
    %203 = vmatpush1.bf16.msra.mxu0 %v186
    %204 = vmatprep.subr.bf16.mxu0 0
    %205 = vmatpush1.bf16.msra.mxu0 %v187
    %206 = vmatprep.subr.bf16.mxu0 0
    %207 = vmatpush1.bf16.msra.mxu0 %v188
    %208 = vmatprep.subr.bf16.mxu0 0
    %209 = vmatpush1.bf16.msra.mxu0 %v189
    %210 = vmatprep.subr.bf16.mxu0 0
    %211 = vmatpush1.bf16.msra.mxu0 %v190
    %212 = vmatprep.subr.bf16.mxu0 0
    %213 = vmatpush1.bf16.msra.mxu0 %v191
    %214 = vmatprep.subr.bf16.mxu0 0
    %215 = vmatpush1.bf16.msra.mxu0 %v192
    %216 = vmatprep.subr.bf16.mxu0 0
    %217 = vmatpush1.bf16.msra.mxu0 %v193
    %218 = vmatprep.subr.bf16.mxu0 0
    %219 = vmatpush1.bf16.msra.mxu0 0
    %220 = vmatprep.subr.bf16.mxu0 0
    %221 = vmatpush1.bf16.msra.mxu0 0
    %222 = vmatprep.subr.bf16.mxu0 0
    %223 = vmatpush1.bf16.msra.mxu0 0
    %224 = vmatprep.subr.bf16.mxu0 0
    %225 = vmatpush1.bf16.msra.mxu0 0
    %226 = vmatprep.subr.bf16.mxu0 0
    %227 = vmatpush1.bf16.msra.mxu0 0
    %228 = vmatprep.subr.bf16.mxu0 0
    %229 = vmatpush1.bf16.msra.mxu0 0
    %230 = vmatprep.subr.bf16.mxu0 0
    %231 = vmatpush1.bf16.msra.mxu0 0
    %232 = vmatprep.subr.bf16.mxu0 0
    %233 = vmatpush1.bf16.msra.mxu0 0
    %234 = vmatprep.mubr.bf16.mxu0 0
    %235 = vmatmul.mubr.bf16.gmra.mrb[0].mxu0 %v130
    %v236 = vpop.f32.mrb[0].mxu0
    %v237 = vadd.f32 %v152, %v236
    %v238 = vpop.f32.mrb[0].mxu0
    %v239 = vpop.f32.mrb[0].mxu0
    %v240 = vpop.f32.mrb[0].mxu0
    %241 = vdwg.mxu0
    %242 = vst [vmem:[%s5] sm:$0xff] %v237
    // Predicated region
    $region34: #{neuralnet_forward.1} parent=1 // pred_check
      _
    $region35: #{neuralnet_forward.1} parent=1 // pred_check_branch
      %244 = sbr.rel (0) target = $region37
    $region36: #{neuralnet_forward.1} parent=1 // pred_region
      _
    $region37: #{neuralnet_forward.1} parent=1 // pred_fallthru
      _
    // Predicated region
    $region38: #{neuralnet_forward.1} parent=1 // pred_check
      _
    $region39: #{neuralnet_forward.1} parent=1 // pred_check_branch
      %246 = sbr.rel (0) target = $region41
    $region40: #{neuralnet_forward.1} parent=1 // pred_region
      _
    $region41: #{neuralnet_forward.1} parent=1 // pred_fallthru
      _
    %247 = vsyncpa [#allocation3], 1
    %248 = vsyncpa [#allocation5], 1

</llo_original>
